<compile_context>
chip_gen: v7x
topology: tpu7x:2x2x1
jax: 0.10.0
libtpu: 0.0.40
codegen_flags: <defaults>
</compile_context>

<pallas_src>
import jax
import jax.numpy as jnp
from jax.experimental import pallas as pl
from jax.experimental.pallas import tpu as pltpu


def mb_net_kernel(xt_ref, w1t_ref, b1_ref, w2t_ref, b2_ref, w3_ref, b3_ref, o_ref):
    x0 = xt_ref[0:1, :]                                   # (1, tb)
    x1 = xt_ref[1:2, :]                                   # (1, tb)

    # fc1 (+ folded normalization), K=2: broadcast FMAs on the VPU in f32
    # (v5e's VALU has no bf16).  ReLU, then cast to bf16 so the (128, tb)
    # intermediate is half the size and is MXU-native for fc2.
    h1 = w1t_ref[:, 0:1] * x0 + w1t_ref[:, 1:2] * x1 + b1_ref[...]   # (128, tb) f32
    h1 = jnp.maximum(h1, 0.0).astype(jnp.bfloat16)                    # (128, tb) bf16

    # dropout(p=0.1) in eval mode is identity.

    # fc2 on the MXU: bf16 (64, 128) @ bf16 (128, tb) with f32 accumulation.
    h2 = jnp.dot(w2t_ref[...], h1, preferred_element_type=jnp.float32) + b2_ref[...]
    h2 = jnp.maximum(h2, 0.0)                                         # (64, tb) f32

    # fc3, N=1: VPU multiply + sublane (XLU) reduce -> lane-dense (1, tb) store.
    o_ref[...] = jnp.sum(w3_ref[...] * h2, axis=0, keepdims=True) + b3_ref[0]


def mb_net_forward(x, params, *, tb=8192):
    """x: (B, 2) float32 -> (B, 1) float32."""
    B, D = x.shape
    assert D == 2
    mean, std, w1, b1, w2, b2, w3, b3 = params

    # Fold normalization into fc1 (plain JAX, f32, done once at trace time).
    inv_std = (1.0 / std).astype(jnp.float32)
    w1f = w1 * inv_std[:, None]                           # (2, 128)
    b1f = b1 - (mean * inv_std) @ w1                      # (128,)

    # Transposed parameter layouts (batch on the lane axis in the kernel).
    w1t = w1f.T                                           # (128, 2)  f32
    b1t = b1f.reshape(128, 1)                             # (128, 1)  f32
    w2t = w2.T.astype(jnp.bfloat16)                       # (64, 128) bf16 (MXU operand)
    b2t = b2.reshape(64, 1)                               # (64, 1)   f32
    w3c = w3.reshape(64, 1)                               # (64, 1)   f32
    b3s = b3.reshape(1).astype(jnp.float32)               # (1,)      f32 scalar -> SMEM

    # Batch tile: multiple of 128 lanes.  Large by default (tb=8192) to amortize
    # the ~0.35us per-grid-step overhead; capped at 16384 lanes so per-step
    # intermediates (~0.4 KiB/lane-column with bf16 h1) stay well within the
    # 32 MiB scoped-VMEM default on v7x.
    lane = 128
    b_lanes = pl.cdiv(B, lane)
    tb_lanes = max(1, min(tb // lane, b_lanes, 128))
    # Guarantee >=2 grid steps for mid-size batches (B > 256) so both v7x
    # TensorCores get work under dimension_semantics=("parallel",).
    if b_lanes > 2 and tb_lanes >= b_lanes:
        tb_lanes = (b_lanes + 1) // 2
    tb = tb_lanes * lane
    Bp = pl.cdiv(B, tb) * tb

    # Transpose first, then pad only along the lane (batch) axis.
    xt = jnp.pad(x.astype(jnp.float32).T, ((0, 0), (0, Bp - B)))      # (2, Bp)

    grid = (Bp // tb,)
    full = lambda shape: pl.BlockSpec(shape, lambda i: (0, 0))        # resident params

    param_bytes = (w1t.size + b1t.size + b2t.size + w3c.size + b3s.size) * 4 + w2t.size * 2
    cost = pl.CostEstimate(
        flops=int(Bp) * (2 * 2 * 128 + 2 * 128 * 64 + 2 * 64),        # fc1 + fc2 + fc3
        transcendentals=0,
        bytes_accessed=int(Bp) * (2 * 4 + 4) + int(param_bytes),
    )

    out = pl.pallas_call(
        mb_net_kernel,
        out_shape=jax.ShapeDtypeStruct((1, Bp), jnp.float32),
        grid_spec=pltpu.PrefetchScalarGridSpec(
            num_scalar_prefetch=0,
            grid=grid,
            in_specs=[
                pl.BlockSpec((2, tb), lambda i: (0, i)),   # x^T tile (lane-dense)
                full((128, 2)),                            # W1^T (norm folded in), f32
                full((128, 1)),                            # b1 (norm folded in), f32
                full((64, 128)),                           # W2^T, bf16
                full((64, 1)),                             # b2, f32
                full((64, 1)),                             # W3, f32
                pl.BlockSpec(memory_space=pltpu.MemorySpace.SMEM),    # b3 scalar
            ],
            out_specs=pl.BlockSpec((1, tb), lambda i: (0, i)),
        ),
        compiler_params=pltpu.CompilerParams(
            dimension_semantics=("parallel",)),
        cost_estimate=cost,
    )(xt, w1t, b1t, w2t, b2t, w3c, b3s)

    # (1, Bp) lane-dense slab -> (B, 1)
    return out.reshape(Bp, 1)[:B]


def init_params(key):
    """Deterministic synthetic parameters matching MB_Net's shapes."""
    k1, k2, k3, k4, k5, k6 = jax.random.split(key, 6)
    # Linear(2,128), Linear(128,64), Linear(64,1) — stored as (in, out).
    w1 = jax.random.normal(k1, (2, 128), jnp.float32) * (1.0 / jnp.sqrt(2.0))
    b1 = jax.random.normal(k2, (128,), jnp.float32) * 0.01
    w2 = jax.random.normal(k3, (128, 64), jnp.float32) * (1.0 / jnp.sqrt(128.0))
    b2 = jax.random.normal(k4, (64,), jnp.float32) * 0.01
    w3 = jax.random.normal(k5, (64, 1), jnp.float32) * (1.0 / jnp.sqrt(64.0))
    b3 = jax.random.normal(k6, (1,), jnp.float32) * 0.01
    # Normalization buffers (shape (2,)), synthetic but deterministic.
    mean = jnp.array([0.5, -0.3], jnp.float32)
    std = jnp.array([1.2, 0.8], jnp.float32)
    return (mean, std, w1, b1, w2, b2, w3, b3)


def mb_net_reference(x, params):
    """Pure-JAX f32 reference of the PyTorch forward (eval mode)."""
    mean, std, w1, b1, w2, b2, w3, b3 = params
    h = (x - mean) / std
    h = jnp.maximum(h @ w1 + b1, 0.0)
    h = jnp.maximum(h @ w2 + b2, 0.0)
    return h @ w3 + b3


if __name__ == "__main__":
    key = jax.random.PRNGKey(0)
    kx, kp = jax.random.split(key)
    params = init_params(kp)

    # Tolerances are loosened vs. the f32 reference because fc2 runs with bf16
    # operands (f32 accumulation) in the kernel.
    ATOL = RTOL = 5e-2

    # Small shape consistent with the module: (B, 2).
    B = 8
    x = jax.random.normal(kx, (B, 2), jnp.float32)
    out = jax.block_until_ready(mb_net_forward(x, params))
    ref = mb_net_reference(x, params)
    assert out.shape == (B, 1), out.shape
    assert jnp.allclose(out, ref, atol=ATOL, rtol=RTOL), (out, ref)

    # Multi-tile + batch-padding path (small explicit tile).
    B2 = 300
    x2 = jax.random.normal(kx, (B2, 2), jnp.float32)
    out2 = jax.block_until_ready(mb_net_forward(x2, params, tb=128))
    ref2 = mb_net_reference(x2, params)
    assert out2.shape == (B2, 1), out2.shape
    assert jnp.allclose(out2, ref2, atol=ATOL, rtol=RTOL)

    # Default large-tile path, exercises the >=2-grid-step (v7x megacore) split.
    B3 = 1000
    x3 = jax.random.normal(kx, (B3, 2), jnp.float32)
    out3 = jax.block_until_ready(mb_net_forward(x3, params))
    ref3 = mb_net_reference(x3, params)
    assert out3.shape == (B3, 1), out3.shape
    assert jnp.allclose(out3, ref3, atol=ATOL, rtol=RTOL)

    print("KERNEL_OK")
</pallas_src>

<mosaic_0001>
module attributes {stable_mosaic.version = 11 : i64} {
  func.func @mb_net_kernel(%arg0: i32, %arg1: memref<2x128xf32, #tpu.memory_space<vmem>>, %arg2: memref<128x2xf32, #tpu.memory_space<vmem>>, %arg3: memref<128x1xf32, #tpu.memory_space<vmem>>, %arg4: memref<64x128xbf16, #tpu.memory_space<vmem>>, %arg5: memref<64x1xf32, #tpu.memory_space<vmem>>, %arg6: memref<64x1xf32, #tpu.memory_space<vmem>>, %arg7: memref<1xf32, #tpu.memory_space<smem>>, %arg8: memref<1x128xf32, #tpu.memory_space<vmem>>) attributes {dimension_semantics = [#tpu.dimension_semantics<parallel>], iteration_bounds = array<i64: 1>, scalar_prefetch = 0 : i64, scratch_operands = 0 : i64, tpu.core_type = #tpu.core_type<tc>, window_params = [{transform_indices = @transform_0, window_bounds = array<i64: 2, 128>}, {pipeline_mode = #tpu.pipeline_mode<synchronous>, transform_indices = @transform_1, window_bounds = array<i64: 128, 2>}, {pipeline_mode = #tpu.pipeline_mode<synchronous>, transform_indices = @transform_2, window_bounds = array<i64: 128, 1>}, {pipeline_mode = #tpu.pipeline_mode<synchronous>, transform_indices = @transform_3, window_bounds = array<i64: 64, 128>}, {pipeline_mode = #tpu.pipeline_mode<synchronous>, transform_indices = @transform_4, window_bounds = array<i64: 64, 1>}, {pipeline_mode = #tpu.pipeline_mode<synchronous>, transform_indices = @transform_5, window_bounds = array<i64: 64, 1>}, {transform_indices = @transform_6, window_bounds = array<i64: 1>}, {transform_indices = @transform_7, window_bounds = array<i64: 1, 128>}]} {
    %c0 = arith.constant 0 : index
    %c0_0 = arith.constant 0 : index
    %0 = vector.load %arg1[%c0, %c0_0] : memref<2x128xf32, #tpu.memory_space<vmem>>, vector<1x128xf32>
    %c1 = arith.constant 1 : index
    %c0_1 = arith.constant 0 : index
    %1 = vector.load %arg1[%c1, %c0_1] : memref<2x128xf32, #tpu.memory_space<vmem>>, vector<1x128xf32>
    %c0_2 = arith.constant 0 : index
    %c0_3 = arith.constant 0 : index
    %2 = vector.load %arg2[%c0_2, %c0_3] : memref<128x2xf32, #tpu.memory_space<vmem>>, vector<128x1xf32>
    %3 = vector.broadcast %2 : vector<128x1xf32> to vector<128x128xf32>
    %4 = vector.broadcast %0 : vector<1x128xf32> to vector<128x128xf32>
    %5 = arith.mulf %3, %4 : vector<128x128xf32>
    %c0_4 = arith.constant 0 : index
    %c1_5 = arith.constant 1 : index
    %6 = vector.load %arg2[%c0_4, %c1_5] : memref<128x2xf32, #tpu.memory_space<vmem>>, vector<128x1xf32>
    %7 = vector.broadcast %6 : vector<128x1xf32> to vector<128x128xf32>
    %8 = vector.broadcast %1 : vector<1x128xf32> to vector<128x128xf32>
    %9 = arith.mulf %7, %8 : vector<128x128xf32>
    %10 = arith.addf %5, %9 : vector<128x128xf32>
    %c0_6 = arith.constant 0 : index
    %c0_7 = arith.constant 0 : index
    %11 = vector.load %arg3[%c0_6, %c0_7] : memref<128x1xf32, #tpu.memory_space<vmem>>, vector<128x1xf32>
    %12 = vector.broadcast %11 : vector<128x1xf32> to vector<128x128xf32>
    %13 = arith.addf %10, %12 : vector<128x128xf32>
    %cst = arith.constant 0.000000e+00 : f32
    %14 = vector.broadcast %cst : f32 to vector<128x128xf32>
    %15 = arith.maximumf %13, %14 : vector<128x128xf32>
    %16 = arith.truncf %15 : vector<128x128xf32> to vector<128x128xbf16>
    %c0_8 = arith.constant 0 : index
    %c0_9 = arith.constant 0 : index
    %17 = vector.load %arg4[%c0_8, %c0_9] : memref<64x128xbf16, #tpu.memory_space<vmem>>, vector<64x128xbf16>
    %cst_10 = arith.constant dense<0.000000e+00> : vector<64x128xf32>
    %18 = tpu.matmul %17, %16, %cst_10 {dimension_numbers = #tpu.dot_dimension_numbers<[1], [0], [0], [1], [0, 0, 1, 1], [], []>} : vector<64x128xbf16>, vector<128x128xbf16>, vector<64x128xf32> -> vector<64x128xf32>
    %c0_11 = arith.constant 0 : index
    %c0_12 = arith.constant 0 : index
    %19 = vector.load %arg5[%c0_11, %c0_12] : memref<64x1xf32, #tpu.memory_space<vmem>>, vector<64x1xf32>
    %20 = vector.broadcast %19 : vector<64x1xf32> to vector<64x128xf32>
    %21 = arith.addf %18, %20 : vector<64x128xf32>
    %cst_13 = arith.constant 0.000000e+00 : f32
    %22 = vector.broadcast %cst_13 : f32 to vector<64x128xf32>
    %23 = arith.maximumf %21, %22 : vector<64x128xf32>
    %c0_14 = arith.constant 0 : index
    %c0_15 = arith.constant 0 : index
    %24 = vector.load %arg6[%c0_14, %c0_15] : memref<64x1xf32, #tpu.memory_space<vmem>>, vector<64x1xf32>
    %25 = vector.broadcast %24 : vector<64x1xf32> to vector<64x128xf32>
    %26 = arith.mulf %25, %23 : vector<64x128xf32>
    %cst_16 = arith.constant dense<0.000000e+00> : vector<128xf32>
    %27 = vector.multi_reduction <add>, %26, %cst_16 [0] : vector<64x128xf32> to vector<128xf32>
    %28 = vector.shape_cast %27 : vector<128xf32> to vector<1x128xf32>
    %c0_17 = arith.constant 0 : index
    %29 = memref.load %arg7[%c0_17] : memref<1xf32, #tpu.memory_space<smem>>
    %30 = vector.broadcast %29 : f32 to vector<1x128xf32>
    %31 = arith.addf %28, %30 : vector<1x128xf32>
    %c0_18 = arith.constant 0 : index
    %c0_19 = arith.constant 0 : index
    %32 = vector.load %arg8[%c0_18, %c0_19] : memref<1x128xf32, #tpu.memory_space<vmem>>, vector<1x128xf32>
    tpu.vector_store %arg8[%c0_18, %c0_19], %31 {strides = array<i32>} : memref<1x128xf32, #tpu.memory_space<vmem>>, vector<1x128xf32>,
    return
  }
  func.func @transform_0(%arg0: i32) -> (i32, i32) {
    %c0_i32 = arith.constant 0 : i32
    %c0_i32_0 = arith.constant 0 : i32
    return %c0_i32, %arg0 : i32, i32
  }
  func.func @transform_1(%arg0: i32) -> (i32, i32) {
    %c0_i32 = arith.constant 0 : i32
    %c0_i32_0 = arith.constant 0 : i32
    %c0_i32_1 = arith.constant 0 : i32
    return %c0_i32, %c0_i32_0 : i32, i32
  }
  func.func @transform_2(%arg0: i32) -> (i32, i32) {
    %c0_i32 = arith.constant 0 : i32
    %c0_i32_0 = arith.constant 0 : i32
    %c0_i32_1 = arith.constant 0 : i32
    return %c0_i32, %c0_i32_0 : i32, i32
  }
  func.func @transform_3(%arg0: i32) -> (i32, i32) {
    %c0_i32 = arith.constant 0 : i32
    %c0_i32_0 = arith.constant 0 : i32
    %c0_i32_1 = arith.constant 0 : i32
    return %c0_i32, %c0_i32_0 : i32, i32
  }
  func.func @transform_4(%arg0: i32) -> (i32, i32) {
    %c0_i32 = arith.constant 0 : i32
    %c0_i32_0 = arith.constant 0 : i32
    %c0_i32_1 = arith.constant 0 : i32
    return %c0_i32, %c0_i32_0 : i32, i32
  }
  func.func @transform_5(%arg0: i32) -> (i32, i32) {
    %c0_i32 = arith.constant 0 : i32
    %c0_i32_0 = arith.constant 0 : i32
    %c0_i32_1 = arith.constant 0 : i32
    return %c0_i32, %c0_i32_0 : i32, i32
  }
  func.func @transform_6(%arg0: i32) -> i32 {
    %c0_i32 = arith.constant 0 : i32
    %c0_i32_0 = arith.constant 0 : i32
    return %c0_i32 : i32
  }
  func.func @transform_7(%arg0: i32) -> (i32, i32) {
    %c0_i32 = arith.constant 0 : i32
    %c0_i32_0 = arith.constant 0 : i32
    return %c0_i32, %arg0 : i32, i32
  }
}

</mosaic_0001>

<llo_original>
// kernel: tpu_custom_call.1
$region0: #{tpu_custom_call.1}
  #allocation0 [shape = 'u32[]', space=smem, size = 0x4, offset = 0x4, fixed_abs, tag = 'smem constant byte address 0x4 - core index']
  #allocation1 [shape = 'u32[144,128]{1,0:T(1,128)}', space=vmem, size = 0x12000, scoped, tag = 'internal scratch']
  #allocation2 [shape = 'f32[1]{0:T(128)S(6)}', space=smem, size = 0x200, scoped, tag = 'scoped memory for tpu_custom_call.1']
  %s0 = inlined_call_operand.vmem [shape: f32[2,128], index: 0, kind: input, shape index: {}]
  %s1 = inlined_call_operand.vmem [shape: f32[128,2], index: 1, kind: input, shape index: {}]
  %s2 = inlined_call_operand.vmem [shape: f32[128,1], index: 2, kind: input, shape index: {}]
  %s3 = inlined_call_operand.vmem [shape: bf16[64,128], index: 3, kind: input, shape index: {}]
  %s4 = inlined_call_operand.vmem [shape: f32[64,1], index: 4, kind: input, shape index: {}]
  %s5 = inlined_call_operand.vmem [shape: f32[64,1], index: 5, kind: input, shape index: {}]
  %s6 = inlined_call_operand.<no memory space> [shape: f32[1], index: 6, kind: input, shape index: {}]
  %s7 = inlined_call_operand.hbm [shape: f32[1,128], index: 7, kind: output, shape index: {}]
  %s8 = sld [smem:[#allocation0]]
  $region38: #{tpu_custom_call.1} parent=0
    _
  %s10 = ssub.s32 1, %s8
  %s11 = scalar_select 0, %s10, %s8
  %12 = sst [smem:[#allocation2]] %s6
  $region1: #{tpu_custom_call.1} parent=0
    #allocation3 [shape = 'u8[512]{0}', space=vmem, size = 0x400, scoped, tag = 'output window, operand 0, single buffered']
    #allocation4 [shape = 's32[1]{0}', space=sflag, size = 0x4, scoped, tag = 'scoped memory for tpu_custom_call.1']
    %13 = vsyncpa [#allocation4], 0
    // Predicated region
    $region2: #{tpu_custom_call.1} parent=1 // pred_check
      _
    $region3: #{tpu_custom_call.1} parent=1 // pred_check_branch
      %15 = sbr.rel (0) target = $region5
    $region4: #{tpu_custom_call.1} parent=1 // pred_region
      _
    $region5: #{tpu_custom_call.1} parent=1 // pred_fallthru
      _
    // Predicated region
    $region6: #{tpu_custom_call.1} parent=1 // pred_check
      _
    $region7: #{tpu_custom_call.1} parent=1 // pred_check_branch
      %17 = sbr.rel (0) target = $region9
    $region8: #{tpu_custom_call.1} parent=1 // pred_region
      _
    $region9: #{tpu_custom_call.1} parent=1 // pred_fallthru
      _
    // Predicated region
    $region10: #{tpu_custom_call.1} parent=1 // pred_check
      _
    $region11: #{tpu_custom_call.1} parent=1 // pred_check_branch
      %19 = sbr.rel (0) target = $region13
    $region12: #{tpu_custom_call.1} parent=1 // pred_region
      _
    $region13: #{tpu_custom_call.1} parent=1 // pred_fallthru
      _
    // Predicated region
    $region14: #{tpu_custom_call.1} parent=1 // pred_check
      _
    $region15: #{tpu_custom_call.1} parent=1 // pred_check_branch
      %21 = sbr.rel (0) target = $region17
    $region16: #{tpu_custom_call.1} parent=1 // pred_region
      _
    $region17: #{tpu_custom_call.1} parent=1 // pred_fallthru
      _
    // Predicated region
    $region18: #{tpu_custom_call.1} parent=1 // pred_check
      _
    $region19: #{tpu_custom_call.1} parent=1 // pred_check_branch
      %23 = sbr.rel (0) target = $region21
    $region20: #{tpu_custom_call.1} parent=1 // pred_region
      _
    $region21: #{tpu_custom_call.1} parent=1 // pred_fallthru
      _
    // Predicated region
    $region22: #{tpu_custom_call.1} parent=1 // pred_check
      _
    $region23: #{tpu_custom_call.1} parent=1 // pred_check_branch
      %25 = sbr.rel (0) target = $region25
    $region24: #{tpu_custom_call.1} parent=1 // pred_region
      _
    $region25: #{tpu_custom_call.1} parent=1 // pred_fallthru
      _
    // Predicated region
    $region26: #{tpu_custom_call.1} parent=1 // pred_check
      _
    $region27: #{tpu_custom_call.1} parent=1 // pred_check_branch
      %27 = sbr.rel (0) target = $region29
    $region28: #{tpu_custom_call.1} parent=1 // pred_region
      _
    $region29: #{tpu_custom_call.1} parent=1 // pred_fallthru
      _
    %v29 = vld [vmem:[%s0] sm:$0x1]
    %v30 = vld [vmem:[%s0 + $0x1] sm:$0x1]
    %v31 = vld [vmem:[%s1] sm:$0xff]
    %v32 = vld [vmem:[%s1 + $0x8] sm:$0xff]
    %v33 = vld [vmem:[%s1 + $0x10] sm:$0xff]
    %v34 = vld [vmem:[%s1 + $0x18] sm:$0xff]
    %v35 = vld [vmem:[%s1 + $0x20] sm:$0xff]
    %v36 = vld [vmem:[%s1 + $0x28] sm:$0xff]
    %v37 = vld [vmem:[%s1 + $0x30] sm:$0xff]
    %v38 = vld [vmem:[%s1 + $0x38] sm:$0xff]
    %v39 = vld [vmem:[%s1 + $0x40] sm:$0xff]
    %v40 = vld [vmem:[%s1 + $0x48] sm:$0xff]
    %v41 = vld [vmem:[%s1 + $0x50] sm:$0xff]
    %v42 = vld [vmem:[%s1 + $0x58] sm:$0xff]
    %v43 = vld [vmem:[%s1 + $0x60] sm:$0xff]
    %v44 = vld [vmem:[%s1 + $0x68] sm:$0xff]
    %v45 = vld [vmem:[%s1 + $0x70] sm:$0xff]
    %v46 = vld [vmem:[%s1 + $0x78] sm:$0xff]
    %48 = vset.pattern.permute.xlu0 0
    %49 = vperm.xlu0 %48, %v31
    %v50 = vpop.permute.xlu0 %49
    %53 = vset.pattern.permute.xlu0 0
    %54 = vperm.xlu0 %53, %v32
    %v55 = vpop.permute.xlu0 %54
    %58 = vset.pattern.permute.xlu0 0
    %59 = vperm.xlu0 %58, %v33
    %v60 = vpop.permute.xlu0 %59
    %63 = vset.pattern.permute.xlu0 0
    %64 = vperm.xlu0 %63, %v34
    %v65 = vpop.permute.xlu0 %64
    %68 = vset.pattern.permute.xlu0 0
    %69 = vperm.xlu0 %68, %v35
    %v70 = vpop.permute.xlu0 %69
    %73 = vset.pattern.permute.xlu0 0
    %74 = vperm.xlu0 %73, %v36
    %v75 = vpop.permute.xlu0 %74
    %78 = vset.pattern.permute.xlu0 0
    %79 = vperm.xlu0 %78, %v37
    %v80 = vpop.permute.xlu0 %79
    %83 = vset.pattern.permute.xlu0 0
    %84 = vperm.xlu0 %83, %v38
    %v85 = vpop.permute.xlu0 %84
    %88 = vset.pattern.permute.xlu0 0
    %89 = vperm.xlu0 %88, %v39
    %v90 = vpop.permute.xlu0 %89
    %93 = vset.pattern.permute.xlu0 0
    %94 = vperm.xlu0 %93, %v40
    %v95 = vpop.permute.xlu0 %94
    %98 = vset.pattern.permute.xlu0 0
    %99 = vperm.xlu0 %98, %v41
    %v100 = vpop.permute.xlu0 %99
    %103 = vset.pattern.permute.xlu0 0
    %104 = vperm.xlu0 %103, %v42
    %v105 = vpop.permute.xlu0 %104
    %108 = vset.pattern.permute.xlu0 0
    %109 = vperm.xlu0 %108, %v43
    %v110 = vpop.permute.xlu0 %109
    %113 = vset.pattern.permute.xlu0 0
    %114 = vperm.xlu0 %113, %v44
    %v115 = vpop.permute.xlu0 %114
    %118 = vset.pattern.permute.xlu0 0
    %119 = vperm.xlu0 %118, %v45
    %v120 = vpop.permute.xlu0 %119
    %123 = vset.pattern.permute.xlu0 0
    %124 = vperm.xlu0 %123, %v46
    %v125 = vpop.permute.xlu0 %124
    %v127 = vlaneseq
    %v128 = vshrl.u32 %v127, 7
    %v129 = vsub.s32 0, %v128
    %v130 = vrot.slane %v29, %v129
    %v131 = vmul.f32 %v50, %v130
    %v132 = vmul.f32 %v55, %v130
    %v133 = vmul.f32 %v60, %v130
    %v134 = vmul.f32 %v65, %v130
    %v135 = vmul.f32 %v70, %v130
    %v136 = vmul.f32 %v75, %v130
    %v137 = vmul.f32 %v80, %v130
    %v138 = vmul.f32 %v85, %v130
    %v139 = vmul.f32 %v90, %v130
    %v140 = vmul.f32 %v95, %v130
    %v141 = vmul.f32 %v100, %v130
    %v142 = vmul.f32 %v105, %v130
    %v143 = vmul.f32 %v110, %v130
    %v144 = vmul.f32 %v115, %v130
    %v145 = vmul.f32 %v120, %v130
    %v146 = vmul.f32 %v125, %v130
    %147 = vset.pattern.permute.xlu0 1
    %148 = vperm.xlu0 %147, %v31
    %v149 = vpop.permute.xlu0 %148
    %151 = vset.pattern.permute.xlu0 1
    %152 = vperm.xlu0 %151, %v32
    %v153 = vpop.permute.xlu0 %152
    %155 = vset.pattern.permute.xlu0 1
    %156 = vperm.xlu0 %155, %v33
    %v157 = vpop.permute.xlu0 %156
    %159 = vset.pattern.permute.xlu0 1
    %160 = vperm.xlu0 %159, %v34
    %v161 = vpop.permute.xlu0 %160
    %163 = vset.pattern.permute.xlu0 1
    %164 = vperm.xlu0 %163, %v35
    %v165 = vpop.permute.xlu0 %164
    %167 = vset.pattern.permute.xlu0 1
    %168 = vperm.xlu0 %167, %v36
    %v169 = vpop.permute.xlu0 %168
    %171 = vset.pattern.permute.xlu0 1
    %172 = vperm.xlu0 %171, %v37
    %v173 = vpop.permute.xlu0 %172
    %175 = vset.pattern.permute.xlu0 1
    %176 = vperm.xlu0 %175, %v38
    %v177 = vpop.permute.xlu0 %176
    %179 = vset.pattern.permute.xlu0 1
    %180 = vperm.xlu0 %179, %v39
    %v181 = vpop.permute.xlu0 %180
    %183 = vset.pattern.permute.xlu0 1
    %184 = vperm.xlu0 %183, %v40
    %v185 = vpop.permute.xlu0 %184
    %187 = vset.pattern.permute.xlu0 1
    %188 = vperm.xlu0 %187, %v41
    %v189 = vpop.permute.xlu0 %188
    %191 = vset.pattern.permute.xlu0 1
    %192 = vperm.xlu0 %191, %v42
    %v193 = vpop.permute.xlu0 %192
    %195 = vset.pattern.permute.xlu0 1
    %196 = vperm.xlu0 %195, %v43
    %v197 = vpop.permute.xlu0 %196
    %199 = vset.pattern.permute.xlu0 1
    %200 = vperm.xlu0 %199, %v44
    %v201 = vpop.permute.xlu0 %200
    %203 = vset.pattern.permute.xlu0 1
    %204 = vperm.xlu0 %203, %v45
    %v205 = vpop.permute.xlu0 %204
    %207 = vset.pattern.permute.xlu0 1
    %208 = vperm.xlu0 %207, %v46
    %v209 = vpop.permute.xlu0 %208
    %v211 = vlaneseq
    %v212 = vshrl.u32 %v211, 7
    %v213 = vsub.s32 0, %v212
    %v214 = vrot.slane %v30, %v213
    %v215 = vmul.f32 %v149, %v214
    %v216 = vmul.f32 %v153, %v214
    %v217 = vmul.f32 %v157, %v214
    %v218 = vmul.f32 %v161, %v214
    %v219 = vmul.f32 %v165, %v214
    %v220 = vmul.f32 %v169, %v214
    %v221 = vmul.f32 %v173, %v214
    %v222 = vmul.f32 %v177, %v214
    %v223 = vmul.f32 %v181, %v214
    %v224 = vmul.f32 %v185, %v214
    %v225 = vmul.f32 %v189, %v214
    %v226 = vmul.f32 %v193, %v214
    %v227 = vmul.f32 %v197, %v214
    %v228 = vmul.f32 %v201, %v214
    %v229 = vmul.f32 %v205, %v214
    %v230 = vmul.f32 %v209, %v214
    %v231 = vadd.f32 %v131, %v215
    %v232 = vadd.f32 %v132, %v216
    %v233 = vadd.f32 %v133, %v217
    %v234 = vadd.f32 %v134, %v218
    %v235 = vadd.f32 %v135, %v219
    %v236 = vadd.f32 %v136, %v220
    %v237 = vadd.f32 %v137, %v221
    %v238 = vadd.f32 %v138, %v222
    %v239 = vadd.f32 %v139, %v223
    %v240 = vadd.f32 %v140, %v224
    %v241 = vadd.f32 %v141, %v225
    %v242 = vadd.f32 %v142, %v226
    %v243 = vadd.f32 %v143, %v227
    %v244 = vadd.f32 %v144, %v228
    %v245 = vadd.f32 %v145, %v229
    %v246 = vadd.f32 %v146, %v230
    %v247 = vld [vmem:[%s2] sm:$0xff]
    %v248 = vld [vmem:[%s2 + $0x8] sm:$0xff]
    %v249 = vld [vmem:[%s2 + $0x10] sm:$0xff]
    %v250 = vld [vmem:[%s2 + $0x18] sm:$0xff]
    %v251 = vld [vmem:[%s2 + $0x20] sm:$0xff]
    %v252 = vld [vmem:[%s2 + $0x28] sm:$0xff]
    %v253 = vld [vmem:[%s2 + $0x30] sm:$0xff]
    %v254 = vld [vmem:[%s2 + $0x38] sm:$0xff]
    %v255 = vld [vmem:[%s2 + $0x40] sm:$0xff]
    %v256 = vld [vmem:[%s2 + $0x48] sm:$0xff]
    %v257 = vld [vmem:[%s2 + $0x50] sm:$0xff]
    %v258 = vld [vmem:[%s2 + $0x58] sm:$0xff]
    %v259 = vld [vmem:[%s2 + $0x60] sm:$0xff]
    %v260 = vld [vmem:[%s2 + $0x68] sm:$0xff]
    %v261 = vld [vmem:[%s2 + $0x70] sm:$0xff]
    %v262 = vld [vmem:[%s2 + $0x78] sm:$0xff]
    %264 = vset.pattern.permute.xlu0 0
    %265 = vperm.xlu0 %264, %v247
    %v266 = vpop.permute.xlu0 %265
    %269 = vset.pattern.permute.xlu0 0
    %270 = vperm.xlu0 %269, %v248
    %v271 = vpop.permute.xlu0 %270
    %274 = vset.pattern.permute.xlu0 0
    %275 = vperm.xlu0 %274, %v249
    %v276 = vpop.permute.xlu0 %275
    %279 = vset.pattern.permute.xlu0 0
    %280 = vperm.xlu0 %279, %v250
    %v281 = vpop.permute.xlu0 %280
    %284 = vset.pattern.permute.xlu0 0
    %285 = vperm.xlu0 %284, %v251
    %v286 = vpop.permute.xlu0 %285
    %289 = vset.pattern.permute.xlu0 0
    %290 = vperm.xlu0 %289, %v252
    %v291 = vpop.permute.xlu0 %290
    %294 = vset.pattern.permute.xlu0 0
    %295 = vperm.xlu0 %294, %v253
    %v296 = vpop.permute.xlu0 %295
    %299 = vset.pattern.permute.xlu0 0
    %300 = vperm.xlu0 %299, %v254
    %v301 = vpop.permute.xlu0 %300
    %304 = vset.pattern.permute.xlu0 0
    %305 = vperm.xlu0 %304, %v255
    %v306 = vpop.permute.xlu0 %305
    %309 = vset.pattern.permute.xlu0 0
    %310 = vperm.xlu0 %309, %v256
    %v311 = vpop.permute.xlu0 %310
    %314 = vset.pattern.permute.xlu0 0
    %315 = vperm.xlu0 %314, %v257
    %v316 = vpop.permute.xlu0 %315
    %319 = vset.pattern.permute.xlu0 0
    %320 = vperm.xlu0 %319, %v258
    %v321 = vpop.permute.xlu0 %320
    %324 = vset.pattern.permute.xlu0 0
    %325 = vperm.xlu0 %324, %v259
    %v326 = vpop.permute.xlu0 %325
    %329 = vset.pattern.permute.xlu0 0
    %330 = vperm.xlu0 %329, %v260
    %v331 = vpop.permute.xlu0 %330
    %334 = vset.pattern.permute.xlu0 0
    %335 = vperm.xlu0 %334, %v261
    %v336 = vpop.permute.xlu0 %335
    %339 = vset.pattern.permute.xlu0 0
    %340 = vperm.xlu0 %339, %v262
    %v341 = vpop.permute.xlu0 %340
    %v343 = vadd.f32 %v231, %v266
    %v344 = vadd.f32 %v232, %v271
    %v345 = vadd.f32 %v233, %v276
    %v346 = vadd.f32 %v234, %v281
    %v347 = vadd.f32 %v235, %v286
    %v348 = vadd.f32 %v236, %v291
    %v349 = vadd.f32 %v237, %v296
    %v350 = vadd.f32 %v238, %v301
    %v351 = vadd.f32 %v239, %v306
    %v352 = vadd.f32 %v240, %v311
    %v353 = vadd.f32 %v241, %v316
    %v354 = vadd.f32 %v242, %v321
    %v355 = vadd.f32 %v243, %v326
    %v356 = vadd.f32 %v244, %v331
    %v357 = vadd.f32 %v245, %v336
    %v358 = vadd.f32 %v246, %v341
    %v359 = vmax.f32 %v343, 0.0
    %v360 = vmax.f32 %v344, 0.0
    %v361 = vmax.f32 %v345, 0.0
    %v362 = vmax.f32 %v346, 0.0
    %v363 = vmax.f32 %v347, 0.0
    %v364 = vmax.f32 %v348, 0.0
    %v365 = vmax.f32 %v349, 0.0
    %v366 = vmax.f32 %v350, 0.0
    %v367 = vmax.f32 %v351, 0.0
    %v368 = vmax.f32 %v352, 0.0
    %v369 = vmax.f32 %v353, 0.0
    %v370 = vmax.f32 %v354, 0.0
    %v371 = vmax.f32 %v355, 0.0
    %v372 = vmax.f32 %v356, 0.0
    %v373 = vmax.f32 %v357, 0.0
    %v374 = vmax.f32 %v358, 0.0
    %v375 = vpack.c.bf16 %v360, %v359
    %v376 = vpack.c.bf16 %v362, %v361
    %v377 = vpack.c.bf16 %v364, %v363
    %v378 = vpack.c.bf16 %v366, %v365
    %v379 = vpack.c.bf16 %v368, %v367
    %v380 = vpack.c.bf16 %v370, %v369
    %v381 = vpack.c.bf16 %v372, %v371
    %v382 = vpack.c.bf16 %v374, %v373
    %v383 = vld [vmem:[%s3] sm:$0xf]
    %v384 = vld [vmem:[%s3 + $0x4] sm:$0xf]
    %v385 = vld [vmem:[%s3 + $0x8] sm:$0xf]
    %v386 = vld [vmem:[%s3 + $0xc] sm:$0xf]
    %v387 = vld [vmem:[%s3 + $0x10] sm:$0xf]
    %v388 = vld [vmem:[%s3 + $0x14] sm:$0xf]
    %v389 = vld [vmem:[%s3 + $0x18] sm:$0xf]
    %v390 = vld [vmem:[%s3 + $0x1c] sm:$0xf]
    %v391 = vld [vmem:[%s4] sm:$0xff]
    %v392 = vld [vmem:[%s4 + $0x8] sm:$0xff]
    %v393 = vld [vmem:[%s4 + $0x10] sm:$0xff]
    %v394 = vld [vmem:[%s4 + $0x18] sm:$0xff]
    %v395 = vld [vmem:[%s4 + $0x20] sm:$0xff]
    %v396 = vld [vmem:[%s4 + $0x28] sm:$0xff]
    %v397 = vld [vmem:[%s4 + $0x30] sm:$0xff]
    %v398 = vld [vmem:[%s4 + $0x38] sm:$0xff]
    %400 = vset.pattern.permute.xlu0 0
    %401 = vperm.xlu0 %400, %v391
    %v402 = vpop.permute.xlu0 %401
    %405 = vset.pattern.permute.xlu0 0
    %406 = vperm.xlu0 %405, %v392
    %v407 = vpop.permute.xlu0 %406
    %410 = vset.pattern.permute.xlu0 0
    %411 = vperm.xlu0 %410, %v393
    %v412 = vpop.permute.xlu0 %411
    %415 = vset.pattern.permute.xlu0 0
    %416 = vperm.xlu0 %415, %v394
    %v417 = vpop.permute.xlu0 %416
    %420 = vset.pattern.permute.xlu0 0
    %421 = vperm.xlu0 %420, %v395
    %v422 = vpop.permute.xlu0 %421
    %425 = vset.pattern.permute.xlu0 0
    %426 = vperm.xlu0 %425, %v396
    %v427 = vpop.permute.xlu0 %426
    %430 = vset.pattern.permute.xlu0 0
    %431 = vperm.xlu0 %430, %v397
    %v432 = vpop.permute.xlu0 %431
    %435 = vset.pattern.permute.xlu0 0
    %436 = vperm.xlu0 %435, %v398
    %v437 = vpop.permute.xlu0 %436
    %v447 = vunpack.c.l.b16 %v383
    %v448 = vunpack.c.l.b16 %v384
    %v449 = vunpack.c.l.b16 %v385
    %v450 = vunpack.c.l.b16 %v386
    %v451 = vunpack.c.l.b16 %v387
    %v452 = vunpack.c.l.b16 %v388
    %v453 = vunpack.c.l.b16 %v389
    %v454 = vunpack.c.l.b16 %v390
    %v455 = vpack.c.b16 %v448, %v447
    %v456 = vpack.c.b16 %v450, %v449
    %v457 = vpack.c.b16 %v452, %v451
    %v458 = vpack.c.b16 %v454, %v453
    %463 = vmatprep.subr.bf16.mxu0 0
    %464 = vmatpush1.bf16.msra.mxu0 %v375
    %465 = vmatprep.subr.bf16.mxu0 0
    %466 = vmatpush1.bf16.msra.mxu0 %v376
    %467 = vmatprep.subr.bf16.mxu0 0
    %468 = vmatpush1.bf16.msra.mxu0 %v377
    %469 = vmatprep.subr.bf16.mxu0 0
    %470 = vmatpush1.bf16.msra.mxu0 %v378
    %471 = vmatprep.subr.bf16.mxu0 0
    %472 = vmatpush1.bf16.msra.mxu0 %v379
    %473 = vmatprep.subr.bf16.mxu0 0
    %474 = vmatpush1.bf16.msra.mxu0 %v380
    %475 = vmatprep.subr.bf16.mxu0 0
    %476 = vmatpush1.bf16.msra.mxu0 %v381
    %477 = vmatprep.subr.bf16.mxu0 0
    %478 = vmatpush1.bf16.msra.mxu0 %v382
    %479 = vmatprep.subr.bf16.mxu0 0
    %480 = vmatpush1.bf16.msra.mxu0 0
    %481 = vmatprep.subr.bf16.mxu0 0
    %482 = vmatpush1.bf16.msra.mxu0 0
    %483 = vmatprep.subr.bf16.mxu0 0
    %484 = vmatpush1.bf16.msra.mxu0 0
    %485 = vmatprep.subr.bf16.mxu0 0
    %486 = vmatpush1.bf16.msra.mxu0 0
    %487 = vmatprep.subr.bf16.mxu0 0
    %488 = vmatpush1.bf16.msra.mxu0 0
    %489 = vmatprep.subr.bf16.mxu0 0
    %490 = vmatpush1.bf16.msra.mxu0 0
    %491 = vmatprep.subr.bf16.mxu0 0
    %492 = vmatpush1.bf16.msra.mxu0 0
    %493 = vmatprep.subr.bf16.mxu0 0
    %494 = vmatpush1.bf16.msra.mxu0 0
    %495 = vmatprep.mubr.bf16.mxu0 0
    %496 = vmatmul.mubr.bf16.gmra.mrb[0].mxu0 %v455
    %v497 = vpop.f32.mrb[0].mxu0
    %v498 = vadd.f32 %v402, %v497
    %v499 = vpop.f32.mrb[0].mxu0
    %v500 = vpop.f32.mrb[0].mxu0
    %v501 = vadd.f32 %v407, %v500
    %v502 = vpop.f32.mrb[0].mxu0
    %503 = vmatprep.mubr.bf16.mxu0 0
    %504 = vmatmul.mubr.bf16.gmra.mrb[0].mxu0 %v456
    %v505 = vpop.f32.mrb[0].mxu0
    %v506 = vadd.f32 %v412, %v505
    %v507 = vpop.f32.mrb[0].mxu0
    %v508 = vpop.f32.mrb[0].mxu0
    %v509 = vadd.f32 %v417, %v508
    %v510 = vpop.f32.mrb[0].mxu0
    %511 = vmatprep.mubr.bf16.mxu0 0
    %512 = vmatmul.mubr.bf16.gmra.mrb[0].mxu0 %v457
    %v513 = vpop.f32.mrb[0].mxu0
    %v514 = vadd.f32 %v422, %v513
    %v515 = vpop.f32.mrb[0].mxu0
    %v516 = vpop.f32.mrb[0].mxu0
    %v517 = vadd.f32 %v427, %v516
    %v518 = vpop.f32.mrb[0].mxu0
    %519 = vmatprep.mubr.bf16.mxu0 0
    %520 = vmatmul.mubr.bf16.gmra.mrb[0].mxu0 %v458
    %v521 = vpop.f32.mrb[0].mxu0
    %v522 = vadd.f32 %v432, %v521
    %v523 = vpop.f32.mrb[0].mxu0
    %v524 = vpop.f32.mrb[0].mxu0
    %v525 = vadd.f32 %v437, %v524
    %v526 = vpop.f32.mrb[0].mxu0
    %527 = vdwg.mxu0
    %v528 = vmax.f32 %v498, 0.0
    %v529 = vmax.f32 %v501, 0.0
    %v530 = vmax.f32 %v506, 0.0
    %v531 = vmax.f32 %v509, 0.0
    %v532 = vmax.f32 %v514, 0.0
    %v533 = vmax.f32 %v517, 0.0
    %v534 = vmax.f32 %v522, 0.0
    %v535 = vmax.f32 %v525, 0.0
    %v536 = vld [vmem:[%s5] sm:$0xff]
    %v537 = vld [vmem:[%s5 + $0x8] sm:$0xff]
    %v538 = vld [vmem:[%s5 + $0x10] sm:$0xff]
    %v539 = vld [vmem:[%s5 + $0x18] sm:$0xff]
    %v540 = vld [vmem:[%s5 + $0x20] sm:$0xff]
    %v541 = vld [vmem:[%s5 + $0x28] sm:$0xff]
    %v542 = vld [vmem:[%s5 + $0x30] sm:$0xff]
    %v543 = vld [vmem:[%s5 + $0x38] sm:$0xff]
    %545 = vset.pattern.permute.xlu0 0
    %546 = vperm.xlu0 %545, %v536
    %v547 = vpop.permute.xlu0 %546
    %550 = vset.pattern.permute.xlu0 0
    %551 = vperm.xlu0 %550, %v537
    %v552 = vpop.permute.xlu0 %551
    %555 = vset.pattern.permute.xlu0 0
    %556 = vperm.xlu0 %555, %v538
    %v557 = vpop.permute.xlu0 %556
    %560 = vset.pattern.permute.xlu0 0
    %561 = vperm.xlu0 %560, %v539
    %v562 = vpop.permute.xlu0 %561
    %565 = vset.pattern.permute.xlu0 0
    %566 = vperm.xlu0 %565, %v540
    %v567 = vpop.permute.xlu0 %566
    %570 = vset.pattern.permute.xlu0 0
    %571 = vperm.xlu0 %570, %v541
    %v572 = vpop.permute.xlu0 %571
    %575 = vset.pattern.permute.xlu0 0
    %576 = vperm.xlu0 %575, %v542
    %v577 = vpop.permute.xlu0 %576
    %580 = vset.pattern.permute.xlu0 0
    %581 = vperm.xlu0 %580, %v543
    %v582 = vpop.permute.xlu0 %581
    %v584 = vmul.f32 %v547, %v528
    %v585 = vmul.f32 %v552, %v529
    %v586 = vmul.f32 %v557, %v530
    %v587 = vmul.f32 %v562, %v531
    %v588 = vmul.f32 %v567, %v532
    %v589 = vmul.f32 %v572, %v533
    %v590 = vmul.f32 %v577, %v534
    %v591 = vmul.f32 %v582, %v535
    %v592 = vadd.f32 %v584, %v585
    %v593 = vadd.f32 %v592, %v586
    %v594 = vadd.f32 %v593, %v587
    %v595 = vadd.f32 %v594, %v588
    %v596 = vadd.f32 %v595, %v589
    %v597 = vadd.f32 %v596, %v590
    %v598 = vadd.f32 %v597, %v591
    %v599 = vrot.slane %v598, 4
    %v600 = vadd.f32 %v598, %v599
    %v601 = vrot.slane %v600, 2
    %v602 = vadd.f32 %v600, %v601
    %v603 = vrot.slane %v602, 1
    %v604 = vadd.f32 %v602, %v603
    %s605 = sld [smem:[#allocation2]]
    %v606 = vstv %s605
    %v607 = vadd.f32 %v604, %v606
    %608 = vst [vmem:[#allocation3] sm:$0x1] %v607
    // Predicated region
    $region30: #{tpu_custom_call.1} parent=1 // pred_check
      _
    $region31: #{tpu_custom_call.1} parent=1 // pred_check_branch
      %610 = sbr.rel (0) target = $region33
    $region32: #{tpu_custom_call.1} parent=1 // pred_region
      %s612 = ssub.s32 16, 16
      %613 = vsyncadd [#allocation4], %s612
      %s615 = sshll.u32 [#allocation3], 4
      %s616 = int_to_ptr.vmem [resolvable:$true] %s615
      %618 = dma.vmem_to_hbm [thread:$0]  %s616, 16, %s7, [#allocation4]
    $region33: #{tpu_custom_call.1} parent=1 // pred_fallthru
      _
    // Predicated region
    $region34: #{tpu_custom_call.1} parent=1 // pred_check
      _
    $region35: #{tpu_custom_call.1} parent=1 // pred_check_branch
      %620 = sbr.rel (0) target = $region37
    $region36: #{tpu_custom_call.1} parent=1 // pred_region
      %621 = dma.done [#allocation4], 16
    $region37: #{tpu_custom_call.1} parent=1 // pred_fallthru
      _
    %622 = vsyncpa [#allocation4], 1

</llo_original>
